<compile_context>
chip_gen: v5e
topology: v5e:2x2
jax: 0.10.0
libtpu: 0.0.40
codegen_flags: <defaults>
</compile_context>

<pallas_src>
import jax
import jax.numpy as jnp
from jax.experimental import pallas as pl
from jax.experimental.pallas import tpu as pltpu

SUBLANE = 8


def qnetwork_kernel(x_ref, w1_ref, b1_ref, w2_ref, b2_ref, w3_ref, b3_ref, o_ref):
    # fc: (TB, S) @ (S, 48) + (1, 48) -> ReLU
    h1 = jnp.dot(x_ref[...], w1_ref[...], preferred_element_type=jnp.float32)
    h1 = jnp.maximum(h1 + b1_ref[...], 0.0)
    # fcQ1: (TB, 48) @ (48, 64) + (1, 64) -> ReLU
    h2 = jnp.dot(h1, w2_ref[...], preferred_element_type=jnp.float32)
    h2 = jnp.maximum(h2 + b2_ref[...], 0.0)
    # fcQ2: (TB, 64) @ (64, A) + (1, A)
    q = jnp.dot(h2, w3_ref[...], preferred_element_type=jnp.float32)
    o_ref[...] = (q + b3_ref[...]).astype(o_ref.dtype)


def _round_up(n, m):
    return ((n + m - 1) // m) * m


def _choose_tb(batch, tb_max):
    """Sublane-aligned batch tile.

    - batch <= 1024: single tile (cheapest for acting / medium training batches).
    - 1024 < batch <= tb_max: split into 2 tiles so v7x's 2 TensorCores both
      get a grid step (on v5e/v6e this costs only one extra ~0.35 us step).
    - batch > tb_max: tb_max rows per tile (grid already has >=2 steps).
    """
    b8 = _round_up(batch, SUBLANE)
    if b8 <= tb_max:
        if b8 > 1024:
            return _round_up(pl.cdiv(b8, 2), SUBLANE)
        return b8
    return tb_max


def qnetwork_forward(x, params, *, tb_max=2048):
    w1, b1, w2, b2, w3, b3 = params
    batch, state_size = x.shape
    hidden1 = w1.shape[1]
    hidden2 = w2.shape[1]
    action_size = w3.shape[1]

    tb = _choose_tb(batch, tb_max)
    grid = (pl.cdiv(batch, tb),)

    # Advisory cost hint so XLA schedules the surrounding graph around this
    # tiny custom call instead of serializing on it.
    flops = 2 * batch * (state_size * hidden1 + hidden1 * hidden2 + hidden2 * action_size)
    bytes_accessed = int(
        x.size * x.dtype.itemsize
        + batch * action_size * 4
        + sum(int(p.size) * p.dtype.itemsize for p in params)
    )
    cost = pl.CostEstimate(flops=flops, transcendentals=0, bytes_accessed=bytes_accessed)

    # Weights/biases: constant index maps -> VMEM-resident across grid steps.
    const_spec = lambda a: pl.BlockSpec(a.shape, lambda i: (0, 0))

    out = pl.pallas_call(
        qnetwork_kernel,
        out_shape=jax.ShapeDtypeStruct((batch, action_size), jnp.float32),
        grid=grid,
        in_specs=[
            pl.BlockSpec((tb, state_size), lambda i: (i, 0)),  # x: tiled over batch
            const_spec(w1), const_spec(b1),
            const_spec(w2), const_spec(b2),
            const_spec(w3), const_spec(b3),
        ],
        # Last dim equals the full array dim -> legal block, no lane padding,
        # no post-kernel slice.
        out_specs=pl.BlockSpec((tb, action_size), lambda i: (i, 0)),
        compiler_params=pltpu.CompilerParams(
            dimension_semantics=("parallel",),  # shard batch tiles across TCs (v7x)
        ),
        cost_estimate=cost,
    )(x, w1, b1, w2, b2, w3, b3)
    return out


def init_params(key, state_size, action_size):
    """Deterministic init mimicking nn.Linear's U(-1/sqrt(fan_in), 1/sqrt(fan_in))."""
    def linear(key, fan_in, fan_out):
        kw, kb = jax.random.split(key)
        bound = 1.0 / jnp.sqrt(fan_in)
        w = jax.random.uniform(kw, (fan_in, fan_out), jnp.float32, -bound, bound)
        b = jax.random.uniform(kb, (1, fan_out), jnp.float32, -bound, bound)
        return w, b

    k1, k2, k3 = jax.random.split(key, 3)
    w1, b1 = linear(k1, state_size, 48)
    w2, b2 = linear(k2, 48, 64)
    w3, b3 = linear(k3, 64, action_size)
    return (w1, b1, w2, b2, w3, b3)


def reference_forward(x, params):
    w1, b1, w2, b2, w3, b3 = params
    h1 = jnp.maximum(x @ w1 + b1, 0.0)
    h2 = jnp.maximum(h1 @ w2 + b2, 0.0)
    return h2 @ w3 + b3


if __name__ == "__main__":
    state_size, action_size = 8, 4
    key = jax.random.PRNGKey(0)
    kx, kp, kx2, kx3 = jax.random.split(key, 4)
    params = init_params(kp, state_size, action_size)

    # Small "acting" batch (single tile, ragged batch of 2 in an 8-row block).
    x_small = jax.random.normal(kx, (2, state_size), jnp.float32)
    out_small = qnetwork_forward(x_small, params)
    jax.block_until_ready(out_small)
    ref_small = reference_forward(x_small, params)
    assert out_small.shape == (2, action_size)
    assert jnp.allclose(out_small, ref_small, atol=1e-5, rtol=1e-5)

    # Typical "training" batch (single 608-row tile, no wrapper padding).
    x_big = jax.random.normal(kx2, (600, state_size), jnp.float32)
    out_big = qnetwork_forward(x_big, params)
    jax.block_until_ready(out_big)
    ref_big = reference_forward(x_big, params)
    assert out_big.shape == (600, action_size)
    assert jnp.allclose(out_big, ref_big, atol=1e-5, rtol=1e-5)

    # Large batch: exercises the >=2-step grid (dual-TC path) + ragged last block.
    x_huge = jax.random.normal(kx3, (1500, state_size), jnp.float32)
    out_huge = qnetwork_forward(x_huge, params)
    jax.block_until_ready(out_huge)
    ref_huge = reference_forward(x_huge, params)
    assert out_huge.shape == (1500, action_size)
    assert jnp.allclose(out_huge, ref_huge, atol=1e-5, rtol=1e-5)

    print("KERNEL_OK")
</pallas_src>

<mosaic_0001>
module attributes {stable_mosaic.version = 11 : i64} {
  func.func @qnetwork_kernel(%arg0: i32, %arg1: memref<8x8xf32, #tpu.memory_space<vmem>>, %arg2: memref<8x48xf32, #tpu.memory_space<vmem>>, %arg3: memref<1x48xf32, #tpu.memory_space<vmem>>, %arg4: memref<48x64xf32, #tpu.memory_space<vmem>>, %arg5: memref<1x64xf32, #tpu.memory_space<vmem>>, %arg6: memref<64x4xf32, #tpu.memory_space<vmem>>, %arg7: memref<1x4xf32, #tpu.memory_space<vmem>>, %arg8: memref<8x4xf32, #tpu.memory_space<vmem>>) attributes {dimension_semantics = [#tpu.dimension_semantics<parallel>], iteration_bounds = array<i64: 1>, scalar_prefetch = 0 : i64, scratch_operands = 0 : i64, tpu.core_type = #tpu.core_type<tc>, window_params = [{transform_indices = @transform_0, window_bounds = array<i64: 8, 8>}, {pipeline_mode = #tpu.pipeline_mode<synchronous>, transform_indices = @transform_1, window_bounds = array<i64: 8, 48>}, {pipeline_mode = #tpu.pipeline_mode<synchronous>, transform_indices = @transform_2, window_bounds = array<i64: 1, 48>}, {pipeline_mode = #tpu.pipeline_mode<synchronous>, transform_indices = @transform_3, window_bounds = array<i64: 48, 64>}, {pipeline_mode = #tpu.pipeline_mode<synchronous>, transform_indices = @transform_4, window_bounds = array<i64: 1, 64>}, {pipeline_mode = #tpu.pipeline_mode<synchronous>, transform_indices = @transform_5, window_bounds = array<i64: 64, 4>}, {pipeline_mode = #tpu.pipeline_mode<synchronous>, transform_indices = @transform_6, window_bounds = array<i64: 1, 4>}, {transform_indices = @transform_7, window_bounds = array<i64: 8, 4>}]} {
    %c0 = arith.constant 0 : index
    %c0_0 = arith.constant 0 : index
    %0 = vector.load %arg1[%c0, %c0_0] : memref<8x8xf32, #tpu.memory_space<vmem>>, vector<8x8xf32>
    %c0_1 = arith.constant 0 : index
    %c0_2 = arith.constant 0 : index
    %1 = vector.load %arg2[%c0_1, %c0_2] : memref<8x48xf32, #tpu.memory_space<vmem>>, vector<8x48xf32>
    %cst = arith.constant dense<0.000000e+00> : vector<8x48xf32>
    %2 = tpu.matmul %0, %1, %cst {dimension_numbers = #tpu.dot_dimension_numbers<[1], [0], [0], [1], [0, 0, 1, 1], [], []>} : vector<8x8xf32>, vector<8x48xf32>, vector<8x48xf32> -> vector<8x48xf32>
    %c0_3 = arith.constant 0 : index
    %c0_4 = arith.constant 0 : index
    %3 = vector.load %arg3[%c0_3, %c0_4] : memref<1x48xf32, #tpu.memory_space<vmem>>, vector<1x48xf32>
    %4 = vector.broadcast %3 : vector<1x48xf32> to vector<8x48xf32>
    %5 = arith.addf %2, %4 : vector<8x48xf32>
    %cst_5 = arith.constant 0.000000e+00 : f32
    %6 = vector.broadcast %cst_5 : f32 to vector<8x48xf32>
    %7 = arith.maximumf %5, %6 : vector<8x48xf32>
    %c0_6 = arith.constant 0 : index
    %c0_7 = arith.constant 0 : index
    %8 = vector.load %arg4[%c0_6, %c0_7] : memref<48x64xf32, #tpu.memory_space<vmem>>, vector<48x64xf32>
    %cst_8 = arith.constant dense<0.000000e+00> : vector<8x64xf32>
    %9 = tpu.matmul %7, %8, %cst_8 {dimension_numbers = #tpu.dot_dimension_numbers<[1], [0], [0], [1], [0, 0, 1, 1], [], []>} : vector<8x48xf32>, vector<48x64xf32>, vector<8x64xf32> -> vector<8x64xf32>
    %c0_9 = arith.constant 0 : index
    %c0_10 = arith.constant 0 : index
    %10 = vector.load %arg5[%c0_9, %c0_10] : memref<1x64xf32, #tpu.memory_space<vmem>>, vector<1x64xf32>
    %11 = vector.broadcast %10 : vector<1x64xf32> to vector<8x64xf32>
    %12 = arith.addf %9, %11 : vector<8x64xf32>
    %cst_11 = arith.constant 0.000000e+00 : f32
    %13 = vector.broadcast %cst_11 : f32 to vector<8x64xf32>
    %14 = arith.maximumf %12, %13 : vector<8x64xf32>
    %c0_12 = arith.constant 0 : index
    %c0_13 = arith.constant 0 : index
    %15 = vector.load %arg6[%c0_12, %c0_13] : memref<64x4xf32, #tpu.memory_space<vmem>>, vector<64x4xf32>
    %cst_14 = arith.constant dense<0.000000e+00> : vector<8x4xf32>
    %16 = tpu.matmul %14, %15, %cst_14 {dimension_numbers = #tpu.dot_dimension_numbers<[1], [0], [0], [1], [0, 0, 1, 1], [], []>} : vector<8x64xf32>, vector<64x4xf32>, vector<8x4xf32> -> vector<8x4xf32>
    %c0_15 = arith.constant 0 : index
    %c0_16 = arith.constant 0 : index
    %17 = vector.load %arg7[%c0_15, %c0_16] : memref<1x4xf32, #tpu.memory_space<vmem>>, vector<1x4xf32>
    %18 = vector.broadcast %17 : vector<1x4xf32> to vector<8x4xf32>
    %19 = arith.addf %16, %18 : vector<8x4xf32>
    %c0_17 = arith.constant 0 : index
    %c0_18 = arith.constant 0 : index
    %20 = vector.load %arg8[%c0_17, %c0_18] : memref<8x4xf32, #tpu.memory_space<vmem>>, vector<8x4xf32>
    tpu.vector_store %arg8[%c0_17, %c0_18], %19 {strides = array<i32>} : memref<8x4xf32, #tpu.memory_space<vmem>>, vector<8x4xf32>,
    return
  }
  func.func @transform_0(%arg0: i32) -> (i32, i32) {
    %c0_i32 = arith.constant 0 : i32
    %c0_i32_0 = arith.constant 0 : i32
    return %arg0, %c0_i32 : i32, i32
  }
  func.func @transform_1(%arg0: i32) -> (i32, i32) {
    %c0_i32 = arith.constant 0 : i32
    %c0_i32_0 = arith.constant 0 : i32
    %c0_i32_1 = arith.constant 0 : i32
    return %c0_i32, %c0_i32_0 : i32, i32
  }
  func.func @transform_2(%arg0: i32) -> (i32, i32) {
    %c0_i32 = arith.constant 0 : i32
    %c0_i32_0 = arith.constant 0 : i32
    %c0_i32_1 = arith.constant 0 : i32
    return %c0_i32, %c0_i32_0 : i32, i32
  }
  func.func @transform_3(%arg0: i32) -> (i32, i32) {
    %c0_i32 = arith.constant 0 : i32
    %c0_i32_0 = arith.constant 0 : i32
    %c0_i32_1 = arith.constant 0 : i32
    return %c0_i32, %c0_i32_0 : i32, i32
  }
  func.func @transform_4(%arg0: i32) -> (i32, i32) {
    %c0_i32 = arith.constant 0 : i32
    %c0_i32_0 = arith.constant 0 : i32
    %c0_i32_1 = arith.constant 0 : i32
    return %c0_i32, %c0_i32_0 : i32, i32
  }
  func.func @transform_5(%arg0: i32) -> (i32, i32) {
    %c0_i32 = arith.constant 0 : i32
    %c0_i32_0 = arith.constant 0 : i32
    %c0_i32_1 = arith.constant 0 : i32
    return %c0_i32, %c0_i32_0 : i32, i32
  }
  func.func @transform_6(%arg0: i32) -> (i32, i32) {
    %c0_i32 = arith.constant 0 : i32
    %c0_i32_0 = arith.constant 0 : i32
    %c0_i32_1 = arith.constant 0 : i32
    return %c0_i32, %c0_i32_0 : i32, i32
  }
  func.func @transform_7(%arg0: i32) -> (i32, i32) {
    %c0_i32 = arith.constant 0 : i32
    %c0_i32_0 = arith.constant 0 : i32
    return %arg0, %c0_i32 : i32, i32
  }
}

</mosaic_0001>

<llo_original>
// kernel: tpu_custom_call.1
$region0: #{tpu_custom_call.1}
  #allocation0 [shape = 'u32[]', space=smem, size = 0x4, offset = 0x4, fixed_abs, tag = 'smem constant byte address 0x4 - core index']
  #allocation1 [shape = 'u32[72,128]{1,0:T(1,128)}', space=vmem, size = 0x9000, scoped, tag = 'internal scratch']
  %s0 = inlined_call_operand.vmem [shape: f32[2,8], index: 0, kind: input, shape index: {}]
  %s1 = inlined_call_operand.vmem [shape: f32[8,48], index: 1, kind: input, shape index: {}]
  %s2 = inlined_call_operand.vmem [shape: f32[1,48], index: 2, kind: input, shape index: {}]
  %s3 = inlined_call_operand.vmem [shape: f32[48,64], index: 3, kind: input, shape index: {}]
  %s4 = inlined_call_operand.vmem [shape: f32[1,64], index: 4, kind: input, shape index: {}]
  %s5 = inlined_call_operand.vmem [shape: f32[64,4], index: 5, kind: input, shape index: {}]
  %s6 = inlined_call_operand.vmem [shape: f32[1,4], index: 6, kind: input, shape index: {}]
  %s7 = inlined_call_operand.hbm [shape: f32[2,4], index: 7, kind: output, shape index: {}]
  %s8 = sld [smem:[#allocation0]]
  $region38: #{tpu_custom_call.1} parent=0
    _
  %s10 = ssub.s32 1, %s8
  %s11 = scalar_select 0, %s10, %s8
  $region1: #{tpu_custom_call.1} parent=0
    #allocation2 [shape = 'u8[4096]{0}', space=vmem, size = 0x1000, scoped, tag = 'output window, operand 0, single buffered']
    #allocation3 [shape = 's32[1]{0}', space=sflag, size = 0x4, scoped, tag = 'scoped memory for tpu_custom_call.1']
    %12 = vsyncpa [#allocation3], 0
    // Predicated region
    $region2: #{tpu_custom_call.1} parent=1 // pred_check
      _
    $region3: #{tpu_custom_call.1} parent=1 // pred_check_branch
      %14 = sbr.rel (0) target = $region5
    $region4: #{tpu_custom_call.1} parent=1 // pred_region
      _
    $region5: #{tpu_custom_call.1} parent=1 // pred_fallthru
      _
    // Predicated region
    $region6: #{tpu_custom_call.1} parent=1 // pred_check
      _
    $region7: #{tpu_custom_call.1} parent=1 // pred_check_branch
      %16 = sbr.rel (0) target = $region9
    $region8: #{tpu_custom_call.1} parent=1 // pred_region
      _
    $region9: #{tpu_custom_call.1} parent=1 // pred_fallthru
      _
    // Predicated region
    $region10: #{tpu_custom_call.1} parent=1 // pred_check
      _
    $region11: #{tpu_custom_call.1} parent=1 // pred_check_branch
      %18 = sbr.rel (0) target = $region13
    $region12: #{tpu_custom_call.1} parent=1 // pred_region
      _
    $region13: #{tpu_custom_call.1} parent=1 // pred_fallthru
      _
    // Predicated region
    $region14: #{tpu_custom_call.1} parent=1 // pred_check
      _
    $region15: #{tpu_custom_call.1} parent=1 // pred_check_branch
      %20 = sbr.rel (0) target = $region17
    $region16: #{tpu_custom_call.1} parent=1 // pred_region
      _
    $region17: #{tpu_custom_call.1} parent=1 // pred_fallthru
      _
    // Predicated region
    $region18: #{tpu_custom_call.1} parent=1 // pred_check
      _
    $region19: #{tpu_custom_call.1} parent=1 // pred_check_branch
      %22 = sbr.rel (0) target = $region21
    $region20: #{tpu_custom_call.1} parent=1 // pred_region
      _
    $region21: #{tpu_custom_call.1} parent=1 // pred_fallthru
      _
    // Predicated region
    $region22: #{tpu_custom_call.1} parent=1 // pred_check
      _
    $region23: #{tpu_custom_call.1} parent=1 // pred_check_branch
      %24 = sbr.rel (0) target = $region25
    $region24: #{tpu_custom_call.1} parent=1 // pred_region
      _
    $region25: #{tpu_custom_call.1} parent=1 // pred_fallthru
      _
    // Predicated region
    $region26: #{tpu_custom_call.1} parent=1 // pred_check
      _
    $region27: #{tpu_custom_call.1} parent=1 // pred_check_branch
      %26 = sbr.rel (0) target = $region29
    $region28: #{tpu_custom_call.1} parent=1 // pred_region
      _
    $region29: #{tpu_custom_call.1} parent=1 // pred_fallthru
      _
    %v27 = vld [vmem:[%s0] sm:$0xff]
    %v28 = vld [vmem:[%s1] sm:$0xff]
    %v29 = vld [vmem:[%s2] sm:$0x1]
    %v31 = vperm.slane %v29, 0
    %vm33 = vcmask 64512
    %v35 = vsel %vm33, %v27, 0
    %37 = vmatpush.msra.mxu0 0.0
    %38 = vmatpush.msra.mxu0 0.0
    %39 = vmatpush.msra.mxu0 0.0
    %40 = vmatpush.msra.mxu0 0.0
    %41 = vmatpush.msra.mxu0 0.0
    %42 = vmatpush.msra.mxu0 0.0
    %43 = vmatpush.msra.mxu0 0.0
    %44 = vmatpush.msra.mxu0 0.0
    %45 = vmatpush.msra.mxu0 0.0
    %46 = vmatpush.msra.mxu0 0.0
    %47 = vmatpush.msra.mxu0 0.0
    %48 = vmatpush.msra.mxu0 0.0
    %49 = vmatpush.msra.mxu0 0.0
    %50 = vmatpush.msra.mxu0 0.0
    %51 = vmatpush.msra.mxu0 0.0
    %52 = vmatpush.msra.mxu0 %v28
    %53 = vmatmul.f32.gmra.mxu0 %v35
    %v54 = vpop.f32.mrf.mxu0
    %v55 = vadd.f32 %v31, %v54
    %56 = vdwg.mxu0
    %v57 = vmax.f32 %v55, 0.0
    %v58 = vld [vmem:[%s3] sm:$0xff]
    %v59 = vld [vmem:[%s3 + $0x8] sm:$0xff]
    %v60 = vld [vmem:[%s3 + $0x10] sm:$0xff]
    %v61 = vld [vmem:[%s3 + $0x18] sm:$0xff]
    %v62 = vld [vmem:[%s3 + $0x20] sm:$0xff]
    %v63 = vld [vmem:[%s3 + $0x28] sm:$0xff]
    %v64 = vld [vmem:[%s4] sm:$0x1]
    %v66 = vperm.slane %v64, 0
    %vm68 = vcmask 392192
    %v70 = vsel %vm68, %v57, 0
    %72 = vmatpush.msra.mxu0 0.0
    %73 = vmatpush.msra.mxu0 0.0
    %74 = vmatpush.msra.mxu0 0.0
    %75 = vmatpush.msra.mxu0 0.0
    %76 = vmatpush.msra.mxu0 0.0
    %77 = vmatpush.msra.mxu0 0.0
    %78 = vmatpush.msra.mxu0 0.0
    %79 = vmatpush.msra.mxu0 0.0
    %80 = vmatpush.msra.mxu0 0.0
    %81 = vmatpush.msra.mxu0 0.0
    %82 = vmatpush.msra.mxu0 %v63
    %83 = vmatpush.msra.mxu0 %v62
    %84 = vmatpush.msra.mxu0 %v61
    %85 = vmatpush.msra.mxu0 %v60
    %86 = vmatpush.msra.mxu0 %v59
    %87 = vmatpush.msra.mxu0 %v58
    %88 = vmatmul.f32.gmra.mxu0 %v70
    %v89 = vpop.f32.mrf.mxu0
    %v90 = vadd.f32 %v66, %v89
    %91 = vdwg.mxu0
    %v92 = vmax.f32 %v90, 0.0
    %v93 = vld [vmem:[%s5] sm:$0xff]
    %v94 = vld [vmem:[%s5 + $0x8] sm:$0xff]
    %v95 = vld [vmem:[%s5 + $0x10] sm:$0xff]
    %v96 = vld [vmem:[%s5 + $0x18] sm:$0xff]
    %v97 = vld [vmem:[%s5 + $0x20] sm:$0xff]
    %v98 = vld [vmem:[%s5 + $0x28] sm:$0xff]
    %v99 = vld [vmem:[%s5 + $0x30] sm:$0xff]
    %v100 = vld [vmem:[%s5 + $0x38] sm:$0xff]
    %v101 = vld [vmem:[%s6] sm:$0x1]
    %v103 = vperm.slane %v101, 0
    %vm105 = vcmask 523264
    %v107 = vsel %vm105, %v92, 0
    %109 = vmatpush.msra.mxu0 0.0
    %110 = vmatpush.msra.mxu0 0.0
    %111 = vmatpush.msra.mxu0 0.0
    %112 = vmatpush.msra.mxu0 0.0
    %113 = vmatpush.msra.mxu0 0.0
    %114 = vmatpush.msra.mxu0 0.0
    %115 = vmatpush.msra.mxu0 0.0
    %116 = vmatpush.msra.mxu0 0.0
    %117 = vmatpush.msra.mxu0 %v100
    %118 = vmatpush.msra.mxu0 %v99
    %119 = vmatpush.msra.mxu0 %v98
    %120 = vmatpush.msra.mxu0 %v97
    %121 = vmatpush.msra.mxu0 %v96
    %122 = vmatpush.msra.mxu0 %v95
    %123 = vmatpush.msra.mxu0 %v94
    %124 = vmatpush.msra.mxu0 %v93
    %125 = vmatmul.f32.gmra.mxu0 %v107
    %v126 = vpop.f32.mrf.mxu0
    %v127 = vadd.f32 %v103, %v126
    %128 = vdwg.mxu0
    %vm129 = vcmask 31744
    %130 = vst.msk [vmem:[#allocation2] sm:$0xff] %vm129, %v127
    // Predicated region
    $region30: #{tpu_custom_call.1} parent=1 // pred_check
      _
    $region31: #{tpu_custom_call.1} parent=1 // pred_check_branch
      %132 = sbr.rel (0) target = $region33
    $region32: #{tpu_custom_call.1} parent=1 // pred_region
      %134 = vsyncadd [#allocation3], 96
      %s135 = sshll.u32 [#allocation2], 4
      %s136 = int_to_ptr.vmem [resolvable:$true] %s135
      %s137 = sshll.u32 %s7, 4
      %s138 = int_to_ptr.hbm [resolvable:$true] %s137
      %143 = dma.vmem_to_hbm [thread:$0]  %s136, 32, %s138, [#allocation3], 32, 32, 2
    $region33: #{tpu_custom_call.1} parent=1 // pred_fallthru
      _
    // Predicated region
    $region34: #{tpu_custom_call.1} parent=1 // pred_check
      _
    $region35: #{tpu_custom_call.1} parent=1 // pred_check_branch
      %145 = sbr.rel (0) target = $region37
    $region36: #{tpu_custom_call.1} parent=1 // pred_region
      %147 = dma.done [#allocation3], 128
    $region37: #{tpu_custom_call.1} parent=1 // pred_fallthru
      _
    %148 = vsyncpa [#allocation3], 1

</llo_original>
